<compile_context>
chip_gen: v7x
topology: tpu7x:2x2x1
jax: 0.10.0
libtpu: 0.0.40
codegen_flags: <defaults>
</compile_context>

<pallas_src>
import jax
import jax.numpy as jnp
from jax.experimental import pallas as pl
from jax.experimental.pallas import tpu as pltpu


def _round_up(a: int, b: int) -> int:
    return (a + b - 1) // b * b


def _gci2_score_kernel(idx_ref, cls_t_ref, rel_t_ref, margin_ref, o_ref):
    """Scores one tile of TILE_N (c, r, d) triples.

    idx_ref:    (3, TILE_N) int32        rows = (c, r, d) indices (streamed)
    cls_t_ref:  (D_pad, Vc_pad) bf16/f32 transposed class table (resident, 1 buf)
    rel_t_ref:  (D_pad, Vr_pad) bf16/f32 transposed relation table (resident, 1 buf)
    margin_ref: (1,) f32 in SMEM         traced margin scalar
    o_ref:      (1, TILE_N) f32          lane-dense scores
    """
    tn = idx_ref.shape[1]
    vc = cls_t_ref.shape[1]
    vr = rel_t_ref.shape[1]
    tdt = cls_t_ref.dtype

    c_idx = idx_ref[0:1, :]                                   # (1, TN) int32
    r_idx = idx_ref[1:2, :]
    d_idx = idx_ref[2:3, :]

    # Fused c/d gather-as-matmul: one-hot difference has values {-1, 0, +1}
    # (exact in bf16), so E[c] - E[d] is a single class-table matmul.
    iota_c = jax.lax.broadcasted_iota(jnp.int32, (vc, tn), 0)
    onehot_cd = (iota_c == c_idx).astype(tdt) - (iota_c == d_idx).astype(tdt)
    iota_r = jax.lax.broadcasted_iota(jnp.int32, (vr, tn), 0)
    onehot_r = (iota_r == r_idx).astype(rel_t_ref.dtype)

    cd = jnp.dot(cls_t_ref[...], onehot_cd,                   # (D, TN) = E[c]-E[d]
                 preferred_element_type=jnp.float32)
    rr = jnp.dot(rel_t_ref[...], onehot_r,                    # (D, TN) = R[r]
                 preferred_element_type=jnp.float32)

    diff = cd + rr                                            # (D, TN) f32
    sq = jnp.sum(diff * diff, axis=0, keepdims=True)          # (1, TN)  (XLU reduce)
    dist = jnp.sqrt(sq)                                       # EUP
    o_ref[...] = jnp.maximum(dist - margin_ref[0], 0.0)       # single lane-dense store


def prepare_gci2_tables(class_embed, rel_embed, table_dtype=jnp.bfloat16):
    """One-time parameter prep (hoist out of per-call forward).

    Tables are transposed (embedding dim on sublanes, vocab on lanes), cast
    (bf16 by default; pass jnp.float32 for exact parity with the f32 module),
    and zero-padded.  Zero padding is safe: padded D rows contribute 0 to the
    squared sum and padded vocab columns are never selected by in-range ids.
    """
    vocab_c, d = class_embed.shape
    vocab_r, d2 = rel_embed.shape
    assert d == d2
    d_pad = _round_up(d, 8)
    vc_pad = _round_up(vocab_c, 128)
    vr_pad = _round_up(vocab_r, 128)
    cls_t = jnp.pad(class_embed.T.astype(table_dtype),
                    ((0, d_pad - d), (0, vc_pad - vocab_c)))
    rel_t = jnp.pad(rel_embed.T.astype(table_dtype),
                    ((0, d_pad - d), (0, vr_pad - vocab_r)))
    return cls_t, rel_t


def infer_gci2_forward(x, cls_t, rel_t, margin=0.1, *, tile_n=4096):
    """Pallas equivalent of InferGCI2Module.forward.

    x:            int (bs, num_classes, 3) triples (c_idx, r_idx, d_idx)
    cls_t, rel_t: prepared tables from prepare_gci2_tables()
    returns:      f32 (bs, num_classes) scores
    """
    bs, num_classes, ents = x.shape
    assert ents == 3
    n = bs * num_classes

    d_pad, vc_pad = cls_t.shape
    vr_pad = rel_t.shape[1]
    table_eb = jnp.dtype(cls_t.dtype).itemsize
    table_bytes = (d_pad * vc_pad + d_pad * vr_pad) * table_eb

    # Per-triple-column VMEM cost inside one grid step: two class one-hot
    # compares + one relation one-hot (table dtype), two (D, TN) f32 temps,
    # plus the streamed int32 indices (sublane-padded) and the f32 output.
    per_col = (2 * vc_pad + vr_pad) * table_eb + 2 * d_pad * 4 + 8 * 4 + 4

    # VMEM residency check (single-buffered tables must fit, v7x has 64 MiB/TC).
    if table_bytes + per_col * 1024 > 32 * 1024 * 1024:
        # TODO(synk): stream/tile the class table or use a scalar-prefetch DMA
        # gather for vocabularies too large for VMEM-resident gather-as-matmul.
        raise NotImplementedError(
            "embedding tables too large for VMEM-resident gather-as-matmul")

    # Tile of triples per grid step: as large as possible while keeping the
    # per-step one-hot + f32 intermediates under ~8 MiB; multiple of 1024 so
    # the (1, TILE_N) output block stays lane-dense and the grid clean.
    cap = max(1024, (8 * 1024 * 1024 // per_col) // 1024 * 1024)
    tile_n = min(int(tile_n), cap)

    n128 = _round_up(n, 128)
    if n128 <= tile_n:
        tn = n128                       # single grid step, block == full array
    else:
        tn = _round_up(tile_n, 1024)
    n_pad = _round_up(n, tn)
    num_tiles = n_pad // tn

    # Index stream: (3, n_pad) int32, tail-padded with a valid id (0); padded
    # scores are dropped below, so no in-kernel masking / OOB gathers.
    flat = x.reshape(-1, 3).astype(jnp.int32).T
    idx = jnp.pad(flat, ((0, 0), (0, n_pad - n)))

    margin_arr = jnp.asarray(margin, jnp.float32).reshape(1)

    est_vmem = table_bytes + per_col * tn + 2 * (8 * tn * 4)
    vmem_limit = int(min(max(est_vmem * 3 // 2, 32 * 1024 * 1024),
                         64 * 1024 * 1024))

    out = pl.pallas_call(
        _gci2_score_kernel,
        out_shape=jax.ShapeDtypeStruct((1, n_pad), jnp.float32),
        grid=(num_tiles,),
        in_specs=[
            # Streamed index triples (double-buffered by default).
            pl.BlockSpec((3, tn), lambda i: (0, i)),
            # Resident tables: constant index_map, single-buffered.
            pl.BlockSpec((d_pad, vc_pad), lambda i: (0, 0),
                         pipeline_mode=pl.Buffered(buffer_count=1)),
            pl.BlockSpec((d_pad, vr_pad), lambda i: (0, 0),
                         pipeline_mode=pl.Buffered(buffer_count=1)),
            # Traced margin scalar in SMEM.
            pl.BlockSpec(memory_space=pltpu.MemorySpace.SMEM),
        ],
        out_specs=pl.BlockSpec((1, tn), lambda i: (0, i)),
        compiler_params=pltpu.CompilerParams(
            dimension_semantics=("parallel",),   # v7x: shard rows across 2 TCs
            vmem_limit_bytes=vmem_limit,
        ),
    )(idx, cls_t, rel_t, margin_arr)

    return out[0, :n].reshape(bs, num_classes)


def reference_forward(x, class_embed, rel_embed, margin=0.1):
    flat = x.reshape(-1, 3)
    c = class_embed[flat[:, 0]]
    r = rel_embed[flat[:, 1]]
    d = class_embed[flat[:, 2]]
    dist = jnp.linalg.norm(c + r - d, axis=-1)
    return jnp.maximum(dist - margin, 0.0).reshape(x.shape[0], x.shape[1])


if __name__ == "__main__":
    key = jax.random.PRNGKey(0)
    k_cls, k_rel, k_c, k_r, k_d = jax.random.split(key, 5)

    bs = 2
    num_classes = 16          # scored classes per example
    vocab_classes = 20        # size of class-embedding table
    vocab_rels = 5            # size of relation-embedding table
    embed_dim = 32
    margin = 0.1

    # Deterministic synthetic embedding tables (module "parameters").
    class_embed = jax.random.normal(k_cls, (vocab_classes, embed_dim), jnp.float32)
    rel_embed = jax.random.normal(k_rel, (vocab_rels, embed_dim), jnp.float32)

    # Input: (bs, num_classes, 3) integer triples, as the module's forward expects.
    c_idx = jax.random.randint(k_c, (bs, num_classes, 1), 0, vocab_classes)
    r_idx = jax.random.randint(k_r, (bs, num_classes, 1), 0, vocab_classes) % vocab_rels
    d_idx = jax.random.randint(k_d, (bs, num_classes, 1), 0, vocab_classes)
    x = jnp.concatenate([c_idx, r_idx, d_idx], axis=-1).astype(jnp.int32)

    # One-time parameter prep (per model, not per forward call).
    cls_t, rel_t = prepare_gci2_tables(class_embed, rel_embed)  # bf16 default

    out = infer_gci2_forward(x, cls_t, rel_t, margin=margin)
    out = jax.block_until_ready(out)

    # Reference uses the same bf16 parameter storage the kernel uses (the only
    # precision difference vs pure f32 is the bf16 cast of the tables; use
    # prepare_gci2_tables(..., table_dtype=jnp.float32) for f32 parity).
    cls_bf = class_embed.astype(jnp.bfloat16).astype(jnp.float32)
    rel_bf = rel_embed.astype(jnp.bfloat16).astype(jnp.float32)
    ref = reference_forward(x, cls_bf, rel_bf, margin=margin)

    assert out.shape == (bs, num_classes)
    assert jnp.allclose(out, ref, atol=1e-4, rtol=1e-4), (out, ref)

    print("KERNEL_OK")
</pallas_src>

<mosaic_0001>
module attributes {stable_mosaic.version = 11 : i64} {
  func.func @_gci2_score_kernel(%arg0: i32, %arg1: memref<3x128xi32, #tpu.memory_space<vmem>>, %arg2: memref<32x128xbf16, #tpu.memory_space<vmem>>, %arg3: memref<32x128xbf16, #tpu.memory_space<vmem>>, %arg4: memref<1xf32, #tpu.memory_space<smem>>, %arg5: memref<1x128xf32, #tpu.memory_space<vmem>>) attributes {dimension_semantics = [#tpu.dimension_semantics<parallel>], iteration_bounds = array<i64: 1>, scalar_prefetch = 0 : i64, scratch_operands = 0 : i64, tpu.core_type = #tpu.core_type<tc>, window_params = [{transform_indices = @transform_0, window_bounds = array<i64: 3, 128>}, {pipeline_mode = #tpu.pipeline_mode<synchronous>, transform_indices = @transform_1, window_bounds = array<i64: 32, 128>}, {pipeline_mode = #tpu.pipeline_mode<synchronous>, transform_indices = @transform_2, window_bounds = array<i64: 32, 128>}, {transform_indices = @transform_3, window_bounds = array<i64: 1>}, {transform_indices = @transform_4, window_bounds = array<i64: 1, 128>}]} {
    %c0 = arith.constant 0 : index
    %c0_0 = arith.constant 0 : index
    %0 = vector.load %arg1[%c0, %c0_0] : memref<3x128xi32, #tpu.memory_space<vmem>>, vector<1x128xi32>
    %c1 = arith.constant 1 : index
    %c0_1 = arith.constant 0 : index
    %1 = vector.load %arg1[%c1, %c0_1] : memref<3x128xi32, #tpu.memory_space<vmem>>, vector<1x128xi32>
    %c2 = arith.constant 2 : index
    %c0_2 = arith.constant 0 : index
    %2 = vector.load %arg1[%c2, %c0_2] : memref<3x128xi32, #tpu.memory_space<vmem>>, vector<1x128xi32>
    %3 = tpu.iota {dimensions = array<i32: 0>} : vector<128x128xi32>
    %4 = vector.broadcast %0 : vector<1x128xi32> to vector<128x128xi32>
    %5 = arith.cmpi eq, %3, %4 : vector<128x128xi32>
    %6 = arith.extui %5 : vector<128x128xi1> to vector<128x128xi32>
    %7 = arith.sitofp %6 : vector<128x128xi32> to vector<128x128xf32>
    %8 = arith.truncf %7 : vector<128x128xf32> to vector<128x128xbf16>
    %9 = vector.broadcast %2 : vector<1x128xi32> to vector<128x128xi32>
    %10 = arith.cmpi eq, %3, %9 : vector<128x128xi32>
    %11 = arith.extui %10 : vector<128x128xi1> to vector<128x128xi32>
    %12 = arith.sitofp %11 : vector<128x128xi32> to vector<128x128xf32>
    %13 = arith.truncf %12 : vector<128x128xf32> to vector<128x128xbf16>
    %14 = arith.subf %8, %13 : vector<128x128xbf16>
    %15 = tpu.iota {dimensions = array<i32: 0>} : vector<128x128xi32>
    %16 = vector.broadcast %1 : vector<1x128xi32> to vector<128x128xi32>
    %17 = arith.cmpi eq, %15, %16 : vector<128x128xi32>
    %18 = arith.extui %17 : vector<128x128xi1> to vector<128x128xi32>
    %19 = arith.sitofp %18 : vector<128x128xi32> to vector<128x128xf32>
    %20 = arith.truncf %19 : vector<128x128xf32> to vector<128x128xbf16>
    %c0_3 = arith.constant 0 : index
    %c0_4 = arith.constant 0 : index
    %21 = vector.load %arg2[%c0_3, %c0_4] : memref<32x128xbf16, #tpu.memory_space<vmem>>, vector<32x128xbf16>
    %cst = arith.constant dense<0.000000e+00> : vector<32x128xf32>
    %22 = tpu.matmul %21, %14, %cst {dimension_numbers = #tpu.dot_dimension_numbers<[1], [0], [0], [1], [0, 0, 1, 1], [], []>} : vector<32x128xbf16>, vector<128x128xbf16>, vector<32x128xf32> -> vector<32x128xf32>
    %c0_5 = arith.constant 0 : index
    %c0_6 = arith.constant 0 : index
    %23 = vector.load %arg3[%c0_5, %c0_6] : memref<32x128xbf16, #tpu.memory_space<vmem>>, vector<32x128xbf16>
    %cst_7 = arith.constant dense<0.000000e+00> : vector<32x128xf32>
    %24 = tpu.matmul %23, %20, %cst_7 {dimension_numbers = #tpu.dot_dimension_numbers<[1], [0], [0], [1], [0, 0, 1, 1], [], []>} : vector<32x128xbf16>, vector<128x128xbf16>, vector<32x128xf32> -> vector<32x128xf32>
    %25 = arith.addf %22, %24 : vector<32x128xf32>
    %26 = arith.mulf %25, %25 : vector<32x128xf32>
    %cst_8 = arith.constant dense<0.000000e+00> : vector<128xf32>
    %27 = vector.multi_reduction <add>, %26, %cst_8 [0] : vector<32x128xf32> to vector<128xf32>
    %28 = vector.shape_cast %27 : vector<128xf32> to vector<1x128xf32>
    %29 = math.sqrt %28 : vector<1x128xf32>
    %c0_9 = arith.constant 0 : index
    %30 = memref.load %arg4[%c0_9] : memref<1xf32, #tpu.memory_space<smem>>
    %31 = vector.broadcast %30 : f32 to vector<1x128xf32>
    %32 = arith.subf %29, %31 : vector<1x128xf32>
    %cst_10 = arith.constant 0.000000e+00 : f32
    %33 = vector.broadcast %cst_10 : f32 to vector<1x128xf32>
    %34 = arith.maximumf %32, %33 : vector<1x128xf32>
    %c0_11 = arith.constant 0 : index
    %c0_12 = arith.constant 0 : index
    %35 = vector.load %arg5[%c0_11, %c0_12] : memref<1x128xf32, #tpu.memory_space<vmem>>, vector<1x128xf32>
    tpu.vector_store %arg5[%c0_11, %c0_12], %34 {strides = array<i32>} : memref<1x128xf32, #tpu.memory_space<vmem>>, vector<1x128xf32>,
    return
  }
  func.func @transform_0(%arg0: i32) -> (i32, i32) {
    %c0_i32 = arith.constant 0 : i32
    %c0_i32_0 = arith.constant 0 : i32
    return %c0_i32, %arg0 : i32, i32
  }
  func.func @transform_1(%arg0: i32) -> (i32, i32) {
    %c0_i32 = arith.constant 0 : i32
    %c0_i32_0 = arith.constant 0 : i32
    %c0_i32_1 = arith.constant 0 : i32
    return %c0_i32, %c0_i32_0 : i32, i32
  }
  func.func @transform_2(%arg0: i32) -> (i32, i32) {
    %c0_i32 = arith.constant 0 : i32
    %c0_i32_0 = arith.constant 0 : i32
    %c0_i32_1 = arith.constant 0 : i32
    return %c0_i32, %c0_i32_0 : i32, i32
  }
  func.func @transform_3(%arg0: i32) -> i32 {
    %c0_i32 = arith.constant 0 : i32
    %c0_i32_0 = arith.constant 0 : i32
    return %c0_i32 : i32
  }
  func.func @transform_4(%arg0: i32) -> (i32, i32) {
    %c0_i32 = arith.constant 0 : i32
    %c0_i32_0 = arith.constant 0 : i32
    return %c0_i32, %arg0 : i32, i32
  }
}

</mosaic_0001>

<llo_original>
// kernel: tpu_custom_call.1
$region0: #{tpu_custom_call.1}
  #allocation0 [shape = 'u32[]', space=smem, size = 0x4, offset = 0x4, fixed_abs, tag = 'smem constant byte address 0x4 - core index']
  #allocation1 [shape = 'u32[144,128]{1,0:T(1,128)}', space=vmem, size = 0x12000, scoped, tag = 'internal scratch']
  #allocation2 [shape = 'f32[1]{0:T(128)S(6)}', space=smem, size = 0x200, scoped, tag = 'scoped memory for tpu_custom_call.1']
  %s0 = inlined_call_operand.hbm [shape: s32[3,128], index: 0, kind: input, shape index: {}]
  %s1 = inlined_call_operand.hbm [shape: bf16[32,128], index: 1, kind: input, shape index: {}]
  %s2 = inlined_call_operand.hbm [shape: bf16[32,128], index: 2, kind: input, shape index: {}]
  %s3 = inlined_call_operand.<no memory space> [shape: f32[1], index: 3, kind: input, shape index: {}]
  %s4 = inlined_call_operand.hbm [shape: f32[1,128], index: 4, kind: output, shape index: {}]
  %s5 = sld [smem:[#allocation0]]
  $region38: #{tpu_custom_call.1} parent=0
    _
  %s7 = ssub.s32 1, %s5
  %s8 = scalar_select 0, %s7, %s5
  %9 = sst [smem:[#allocation2]] %s3
  $region1: #{tpu_custom_call.1} parent=0
    #allocation3 [shape = 'u8[2048]{0}', space=vmem, size = 0x800, scoped, tag = 'input window, operand 0, single buffered']
    #allocation4 [shape = 's32[1]{0}', space=sflag, size = 0x4, scoped, tag = 'scoped memory for tpu_custom_call.1']
    #allocation5 [shape = 's32[1]{0}', space=sflag, size = 0x4, scoped, tag = 'scoped memory for tpu_custom_call.1']
    #allocation6 [shape = 'u8[8192]{0}', space=vmem, size = 0x2000, scoped, tag = 'input window, operand 1, single buffered']
    #allocation7 [shape = 's32[1]{0}', space=sflag, size = 0x4, scoped, tag = 'scoped memory for tpu_custom_call.1']
    #allocation8 [shape = 'u8[8192]{0}', space=vmem, size = 0x2000, scoped, tag = 'input window, operand 2, single buffered']
    #allocation9 [shape = 'u8[512]{0}', space=vmem, size = 0x400, scoped, tag = 'output window, operand 0, single buffered']
    %10 = vsyncpa [#allocation4], 0
    %11 = vsyncpa [#allocation7], 0
    %12 = vsyncpa [#allocation5], 0
    // Predicated region
    $region2: #{tpu_custom_call.1} parent=1 // pred_check
      _
    $region3: #{tpu_custom_call.1} parent=1 // pred_check_branch
      %14 = sbr.rel (0) target = $region5
    $region4: #{tpu_custom_call.1} parent=1 // pred_region
      %s16 = ssub.s32 64, 64
      %17 = vsyncadd [#allocation4], %s16
      %s19 = sshll.u32 [#allocation3], 4
      %s20 = int_to_ptr.vmem [resolvable:$true] %s19
      %22 = dma.hbm_to_vmem [thread:$0]  %s0, 64, %s20, [#allocation4]
    $region5: #{tpu_custom_call.1} parent=1 // pred_fallthru
      _
    // Predicated region
    $region6: #{tpu_custom_call.1} parent=1 // pred_check
      _
    $region7: #{tpu_custom_call.1} parent=1 // pred_check_branch
      %24 = sbr.rel (0) target = $region9
    $region8: #{tpu_custom_call.1} parent=1 // pred_region
      %s26 = ssub.s32 256, 256
      %27 = vsyncadd [#allocation7], %s26
      %s28 = sshll.u32 [#allocation6], 4
      %s29 = int_to_ptr.vmem [resolvable:$true] %s28
      %34 = dma.hbm_to_vmem [thread:$0]  %s1, 256, %s29, [#allocation7], 64, 64, 4
    $region9: #{tpu_custom_call.1} parent=1 // pred_fallthru
      _
    // Predicated region
    $region10: #{tpu_custom_call.1} parent=1 // pred_check
      _
    $region11: #{tpu_custom_call.1} parent=1 // pred_check_branch
      %36 = sbr.rel (0) target = $region13
    $region12: #{tpu_custom_call.1} parent=1 // pred_region
      %s38 = ssub.s32 256, 256
      %39 = vsyncadd [#allocation7], %s38
      %s40 = sshll.u32 [#allocation8], 4
      %s41 = int_to_ptr.vmem [resolvable:$true] %s40
      %46 = dma.hbm_to_vmem [thread:$0]  %s2, 256, %s41, [#allocation7], 64, 64, 4
    $region13: #{tpu_custom_call.1} parent=1 // pred_fallthru
      _
    // Predicated region
    $region14: #{tpu_custom_call.1} parent=1 // pred_check
      _
    $region15: #{tpu_custom_call.1} parent=1 // pred_check_branch
      %48 = sbr.rel (0) target = $region17
    $region16: #{tpu_custom_call.1} parent=1 // pred_region
      _
    $region17: #{tpu_custom_call.1} parent=1 // pred_fallthru
      _
    // Predicated region
    $region18: #{tpu_custom_call.1} parent=1 // pred_check
      _
    $region19: #{tpu_custom_call.1} parent=1 // pred_check_branch
      %50 = sbr.rel (0) target = $region21
    $region20: #{tpu_custom_call.1} parent=1 // pred_region
      %51 = dma.done [#allocation4], 64
    $region21: #{tpu_custom_call.1} parent=1 // pred_fallthru
      _
    // Predicated region
    $region22: #{tpu_custom_call.1} parent=1 // pred_check
      _
    $region23: #{tpu_custom_call.1} parent=1 // pred_check_branch
      %53 = sbr.rel (0) target = $region25
    $region24: #{tpu_custom_call.1} parent=1 // pred_region
      %54 = dma.done [#allocation7], 256
    $region25: #{tpu_custom_call.1} parent=1 // pred_fallthru
      _
    // Predicated region
    $region26: #{tpu_custom_call.1} parent=1 // pred_check
      _
    $region27: #{tpu_custom_call.1} parent=1 // pred_check_branch
      %56 = sbr.rel (0) target = $region29
    $region28: #{tpu_custom_call.1} parent=1 // pred_region
      %57 = dma.done [#allocation7], 256
    $region29: #{tpu_custom_call.1} parent=1 // pred_fallthru
      _
    %v59 = vld [vmem:[#allocation3] sm:$0x1]
    %v60 = vld [vmem:[#allocation3 + $0x1] sm:$0x1]
    %v61 = vld [vmem:[#allocation3 + $0x2] sm:$0x1]
    %v62 = vlaneseq
    %v63 = vshrl.u32 %v62, 7
    %v64 = vadd.s32 %v63, 8
    %v65 = vadd.s32 %v63, 16
    %v66 = vadd.s32 %v63, 24
    %v67 = vadd.s32 %v63, 32
    %v68 = vadd.s32 %v63, 40
    %v69 = vadd.s32 %v63, 48
    %v70 = vadd.s32 %v63, 56
    %v71 = vadd.s32 %v63, 64
    %v72 = vadd.s32 %v63, 72
    %v73 = vadd.s32 %v63, 80
    %v74 = vadd.s32 %v63, 88
    %v75 = vadd.s32 %v63, 96
    %v76 = vadd.s32 %v63, 104
    %v77 = vadd.s32 %v63, 112
    %v78 = vadd.s32 %v63, 120
    %v79 = vlaneseq
    %v80 = vshrl.u32 %v79, 7
    %v81 = vsub.s32 0, %v80
    %v82 = vrot.slane %v59, %v81
    %vm83 = vcmp.eq.s32.totalorder %v63, %v82
    %vm84 = vcmp.eq.s32.totalorder %v64, %v82
    %vm85 = vcmp.eq.s32.totalorder %v65, %v82
    %vm86 = vcmp.eq.s32.totalorder %v66, %v82
    %vm87 = vcmp.eq.s32.totalorder %v67, %v82
    %vm88 = vcmp.eq.s32.totalorder %v68, %v82
    %vm89 = vcmp.eq.s32.totalorder %v69, %v82
    %vm90 = vcmp.eq.s32.totalorder %v70, %v82
    %vm91 = vcmp.eq.s32.totalorder %v71, %v82
    %vm92 = vcmp.eq.s32.totalorder %v72, %v82
    %vm93 = vcmp.eq.s32.totalorder %v73, %v82
    %vm94 = vcmp.eq.s32.totalorder %v74, %v82
    %vm95 = vcmp.eq.s32.totalorder %v75, %v82
    %vm96 = vcmp.eq.s32.totalorder %v76, %v82
    %vm97 = vcmp.eq.s32.totalorder %v77, %v82
    %vm98 = vcmp.eq.s32.totalorder %v78, %v82
    %v99 = vsel %vm83, 1, 0
    %v100 = vsel %vm84, 1, 0
    %v101 = vsel %vm85, 1, 0
    %v102 = vsel %vm86, 1, 0
    %v103 = vsel %vm87, 1, 0
    %v104 = vsel %vm88, 1, 0
    %v105 = vsel %vm89, 1, 0
    %v106 = vsel %vm90, 1, 0
    %v107 = vsel %vm91, 1, 0
    %v108 = vsel %vm92, 1, 0
    %v109 = vsel %vm93, 1, 0
    %v110 = vsel %vm94, 1, 0
    %v111 = vsel %vm95, 1, 0
    %v112 = vsel %vm96, 1, 0
    %v113 = vsel %vm97, 1, 0
    %v114 = vsel %vm98, 1, 0
    %v115 = vcvt.s32.f32 %v99
    %v116 = vcvt.s32.f32 %v100
    %v117 = vcvt.s32.f32 %v101
    %v118 = vcvt.s32.f32 %v102
    %v119 = vcvt.s32.f32 %v103
    %v120 = vcvt.s32.f32 %v104
    %v121 = vcvt.s32.f32 %v105
    %v122 = vcvt.s32.f32 %v106
    %v123 = vcvt.s32.f32 %v107
    %v124 = vcvt.s32.f32 %v108
    %v125 = vcvt.s32.f32 %v109
    %v126 = vcvt.s32.f32 %v110
    %v127 = vcvt.s32.f32 %v111
    %v128 = vcvt.s32.f32 %v112
    %v129 = vcvt.s32.f32 %v113
    %v130 = vcvt.s32.f32 %v114
    %v131 = vpack.c.bf16 %v116, %v115
    %v132 = vpack.c.bf16 %v118, %v117
    %v133 = vpack.c.bf16 %v120, %v119
    %v134 = vpack.c.bf16 %v122, %v121
    %v135 = vpack.c.bf16 %v124, %v123
    %v136 = vpack.c.bf16 %v126, %v125
    %v137 = vpack.c.bf16 %v128, %v127
    %v138 = vpack.c.bf16 %v130, %v129
    %v139 = vlaneseq
    %v140 = vshrl.u32 %v139, 7
    %v141 = vsub.s32 0, %v140
    %v142 = vrot.slane %v61, %v141
    %vm143 = vcmp.eq.s32.totalorder %v63, %v142
    %vm144 = vcmp.eq.s32.totalorder %v64, %v142
    %vm145 = vcmp.eq.s32.totalorder %v65, %v142
    %vm146 = vcmp.eq.s32.totalorder %v66, %v142
    %vm147 = vcmp.eq.s32.totalorder %v67, %v142
    %vm148 = vcmp.eq.s32.totalorder %v68, %v142
    %vm149 = vcmp.eq.s32.totalorder %v69, %v142
    %vm150 = vcmp.eq.s32.totalorder %v70, %v142
    %vm151 = vcmp.eq.s32.totalorder %v71, %v142
    %vm152 = vcmp.eq.s32.totalorder %v72, %v142
    %vm153 = vcmp.eq.s32.totalorder %v73, %v142
    %vm154 = vcmp.eq.s32.totalorder %v74, %v142
    %vm155 = vcmp.eq.s32.totalorder %v75, %v142
    %vm156 = vcmp.eq.s32.totalorder %v76, %v142
    %vm157 = vcmp.eq.s32.totalorder %v77, %v142
    %vm158 = vcmp.eq.s32.totalorder %v78, %v142
    %v159 = vsel %vm143, 1, 0
    %v160 = vsel %vm144, 1, 0
    %v161 = vsel %vm145, 1, 0
    %v162 = vsel %vm146, 1, 0
    %v163 = vsel %vm147, 1, 0
    %v164 = vsel %vm148, 1, 0
    %v165 = vsel %vm149, 1, 0
    %v166 = vsel %vm150, 1, 0
    %v167 = vsel %vm151, 1, 0
    %v168 = vsel %vm152, 1, 0
    %v169 = vsel %vm153, 1, 0
    %v170 = vsel %vm154, 1, 0
    %v171 = vsel %vm155, 1, 0
    %v172 = vsel %vm156, 1, 0
    %v173 = vsel %vm157, 1, 0
    %v174 = vsel %vm158, 1, 0
    %v175 = vcvt.s32.f32 %v159
    %v176 = vcvt.s32.f32 %v160
    %v177 = vcvt.s32.f32 %v161
    %v178 = vcvt.s32.f32 %v162
    %v179 = vcvt.s32.f32 %v163
    %v180 = vcvt.s32.f32 %v164
    %v181 = vcvt.s32.f32 %v165
    %v182 = vcvt.s32.f32 %v166
    %v183 = vcvt.s32.f32 %v167
    %v184 = vcvt.s32.f32 %v168
    %v185 = vcvt.s32.f32 %v169
    %v186 = vcvt.s32.f32 %v170
    %v187 = vcvt.s32.f32 %v171
    %v188 = vcvt.s32.f32 %v172
    %v189 = vcvt.s32.f32 %v173
    %v190 = vcvt.s32.f32 %v174
    %v191 = vpack.c.bf16 %v176, %v175
    %v192 = vpack.c.bf16 %v178, %v177
    %v193 = vpack.c.bf16 %v180, %v179
    %v194 = vpack.c.bf16 %v182, %v181
    %v195 = vpack.c.bf16 %v184, %v183
    %v196 = vpack.c.bf16 %v186, %v185
    %v197 = vpack.c.bf16 %v188, %v187
    %v198 = vpack.c.bf16 %v190, %v189
    %v199 = vsub.bf16 %v131, %v191
    %v200 = vsub.bf16 %v132, %v192
    %v201 = vsub.bf16 %v133, %v193
    %v202 = vsub.bf16 %v134, %v194
    %v203 = vsub.bf16 %v135, %v195
    %v204 = vsub.bf16 %v136, %v196
    %v205 = vsub.bf16 %v137, %v197
    %v206 = vsub.bf16 %v138, %v198
    %v207 = vlaneseq
    %v208 = vshrl.u32 %v207, 7
    %v209 = vsub.s32 0, %v208
    %v210 = vrot.slane %v60, %v209
    %vm211 = vcmp.eq.s32.totalorder %v63, %v210
    %vm212 = vcmp.eq.s32.totalorder %v64, %v210
    %vm213 = vcmp.eq.s32.totalorder %v65, %v210
    %vm214 = vcmp.eq.s32.totalorder %v66, %v210
    %vm215 = vcmp.eq.s32.totalorder %v67, %v210
    %vm216 = vcmp.eq.s32.totalorder %v68, %v210
    %vm217 = vcmp.eq.s32.totalorder %v69, %v210
    %vm218 = vcmp.eq.s32.totalorder %v70, %v210
    %vm219 = vcmp.eq.s32.totalorder %v71, %v210
    %vm220 = vcmp.eq.s32.totalorder %v72, %v210
    %vm221 = vcmp.eq.s32.totalorder %v73, %v210
    %vm222 = vcmp.eq.s32.totalorder %v74, %v210
    %vm223 = vcmp.eq.s32.totalorder %v75, %v210
    %vm224 = vcmp.eq.s32.totalorder %v76, %v210
    %vm225 = vcmp.eq.s32.totalorder %v77, %v210
    %vm226 = vcmp.eq.s32.totalorder %v78, %v210
    %v227 = vsel %vm211, 1, 0
    %v228 = vsel %vm212, 1, 0
    %v229 = vsel %vm213, 1, 0
    %v230 = vsel %vm214, 1, 0
    %v231 = vsel %vm215, 1, 0
    %v232 = vsel %vm216, 1, 0
    %v233 = vsel %vm217, 1, 0
    %v234 = vsel %vm218, 1, 0
    %v235 = vsel %vm219, 1, 0
    %v236 = vsel %vm220, 1, 0
    %v237 = vsel %vm221, 1, 0
    %v238 = vsel %vm222, 1, 0
    %v239 = vsel %vm223, 1, 0
    %v240 = vsel %vm224, 1, 0
    %v241 = vsel %vm225, 1, 0
    %v242 = vsel %vm226, 1, 0
    %v243 = vcvt.s32.f32 %v227
    %v244 = vcvt.s32.f32 %v228
    %v245 = vcvt.s32.f32 %v229
    %v246 = vcvt.s32.f32 %v230
    %v247 = vcvt.s32.f32 %v231
    %v248 = vcvt.s32.f32 %v232
    %v249 = vcvt.s32.f32 %v233
    %v250 = vcvt.s32.f32 %v234
    %v251 = vcvt.s32.f32 %v235
    %v252 = vcvt.s32.f32 %v236
    %v253 = vcvt.s32.f32 %v237
    %v254 = vcvt.s32.f32 %v238
    %v255 = vcvt.s32.f32 %v239
    %v256 = vcvt.s32.f32 %v240
    %v257 = vcvt.s32.f32 %v241
    %v258 = vcvt.s32.f32 %v242
    %v259 = vpack.c.bf16 %v244, %v243
    %v260 = vpack.c.bf16 %v246, %v245
    %v261 = vpack.c.bf16 %v248, %v247
    %v262 = vpack.c.bf16 %v250, %v249
    %v263 = vpack.c.bf16 %v252, %v251
    %v264 = vpack.c.bf16 %v254, %v253
    %v265 = vpack.c.bf16 %v256, %v255
    %v266 = vpack.c.bf16 %v258, %v257
    %v267 = vld [vmem:[#allocation6] sm:$0xf]
    %v268 = vld [vmem:[#allocation6 + $0x4] sm:$0xf]
    %v269 = vld [vmem:[#allocation6 + $0x8] sm:$0xf]
    %v270 = vld [vmem:[#allocation6 + $0xc] sm:$0xf]
    %v271 = vld [vmem:[#allocation8] sm:$0xf]
    %v272 = vld [vmem:[#allocation8 + $0x4] sm:$0xf]
    %v273 = vld [vmem:[#allocation8 + $0x8] sm:$0xf]
    %v274 = vld [vmem:[#allocation8 + $0xc] sm:$0xf]
    %v279 = vunpack.c.l.b16 %v271
    %v280 = vunpack.c.l.b16 %v272
    %v281 = vunpack.c.l.b16 %v273
    %v282 = vunpack.c.l.b16 %v274
    %v283 = vpack.c.b16 %v280, %v279
    %v284 = vpack.c.b16 %v282, %v281
    %287 = vmatprep.subr.bf16.mxu0 0
    %288 = vmatpush1.bf16.msra.mxu0 %v259
    %289 = vmatprep.subr.bf16.mxu0 0
    %290 = vmatpush1.bf16.msra.mxu0 %v260
    %291 = vmatprep.subr.bf16.mxu0 0
    %292 = vmatpush1.bf16.msra.mxu0 %v261
    %293 = vmatprep.subr.bf16.mxu0 0
    %294 = vmatpush1.bf16.msra.mxu0 %v262
    %295 = vmatprep.subr.bf16.mxu0 0
    %296 = vmatpush1.bf16.msra.mxu0 %v263
    %297 = vmatprep.subr.bf16.mxu0 0
    %298 = vmatpush1.bf16.msra.mxu0 %v264
    %299 = vmatprep.subr.bf16.mxu0 0
    %300 = vmatpush1.bf16.msra.mxu0 %v265
    %301 = vmatprep.subr.bf16.mxu0 0
    %302 = vmatpush1.bf16.msra.mxu0 %v266
    %303 = vmatprep.subr.bf16.mxu0 0
    %304 = vmatpush1.bf16.msra.mxu0 0
    %305 = vmatprep.subr.bf16.mxu0 0
    %306 = vmatpush1.bf16.msra.mxu0 0
    %307 = vmatprep.subr.bf16.mxu0 0
    %308 = vmatpush1.bf16.msra.mxu0 0
    %309 = vmatprep.subr.bf16.mxu0 0
    %310 = vmatpush1.bf16.msra.mxu0 0
    %311 = vmatprep.subr.bf16.mxu0 0
    %312 = vmatpush1.bf16.msra.mxu0 0
    %313 = vmatprep.subr.bf16.mxu0 0
    %314 = vmatpush1.bf16.msra.mxu0 0
    %315 = vmatprep.subr.bf16.mxu0 0
    %316 = vmatpush1.bf16.msra.mxu0 0
    %317 = vmatprep.subr.bf16.mxu0 0
    %318 = vmatpush1.bf16.msra.mxu0 0
    %319 = vmatprep.mubr.bf16.mxu0 0
    %320 = vmatmul.mubr.bf16.gmra.mrb[0].mxu0 %v283
    %v321 = vpop.f32.mrb[0].mxu0
    %v322 = vadd.f32 0.0, %v321
    %v323 = vpop.f32.mrb[0].mxu0
    %v324 = vpop.f32.mrb[0].mxu0
    %v325 = vadd.f32 0.0, %v324
    %v326 = vpop.f32.mrb[0].mxu0
    %327 = vmatprep.mubr.bf16.mxu0 0
    %328 = vmatmul.mubr.bf16.gmra.mrb[0].mxu0 %v284
    %v329 = vpop.f32.mrb[0].mxu0
    %v330 = vadd.f32 0.0, %v329
    %v331 = vpop.f32.mrb[0].mxu0
    %v332 = vpop.f32.mrb[0].mxu0
    %v333 = vadd.f32 0.0, %v332
    %v334 = vpop.f32.mrb[0].mxu0
    %335 = vdwg.mxu0
    %v340 = vunpack.c.l.b16 %v267
    %v341 = vunpack.c.l.b16 %v268
    %v342 = vunpack.c.l.b16 %v269
    %v343 = vunpack.c.l.b16 %v270
    %v344 = vpack.c.b16 %v341, %v340
    %v345 = vpack.c.b16 %v343, %v342
    %348 = vmatprep.subr.bf16.mxu0 0
    %349 = vmatpush1.bf16.msra.mxu0 %v199
    %350 = vmatprep.subr.bf16.mxu0 0
    %351 = vmatpush1.bf16.msra.mxu0 %v200
    %352 = vmatprep.subr.bf16.mxu0 0
    %353 = vmatpush1.bf16.msra.mxu0 %v201
    %354 = vmatprep.subr.bf16.mxu0 0
    %355 = vmatpush1.bf16.msra.mxu0 %v202
    %356 = vmatprep.subr.bf16.mxu0 0
    %357 = vmatpush1.bf16.msra.mxu0 %v203
    %358 = vmatprep.subr.bf16.mxu0 0
    %359 = vmatpush1.bf16.msra.mxu0 %v204
    %360 = vmatprep.subr.bf16.mxu0 0
    %361 = vmatpush1.bf16.msra.mxu0 %v205
    %362 = vmatprep.subr.bf16.mxu0 0
    %363 = vmatpush1.bf16.msra.mxu0 %v206
    %364 = vmatprep.subr.bf16.mxu0 0
    %365 = vmatpush1.bf16.msra.mxu0 0
    %366 = vmatprep.subr.bf16.mxu0 0
    %367 = vmatpush1.bf16.msra.mxu0 0
    %368 = vmatprep.subr.bf16.mxu0 0
    %369 = vmatpush1.bf16.msra.mxu0 0
    %370 = vmatprep.subr.bf16.mxu0 0
    %371 = vmatpush1.bf16.msra.mxu0 0
    %372 = vmatprep.subr.bf16.mxu0 0
    %373 = vmatpush1.bf16.msra.mxu0 0
    %374 = vmatprep.subr.bf16.mxu0 0
    %375 = vmatpush1.bf16.msra.mxu0 0
    %376 = vmatprep.subr.bf16.mxu0 0
    %377 = vmatpush1.bf16.msra.mxu0 0
    %378 = vmatprep.subr.bf16.mxu0 0
    %379 = vmatpush1.bf16.msra.mxu0 0
    %380 = vmatprep.mubr.bf16.mxu0 0
    %381 = vmatmul.mubr.bf16.gmra.mrb[0].mxu0 %v344
    %v382 = vpop.f32.mrb[0].mxu0
    %v383 = vadd.f32 %v322, %v382
    %v384 = vpop.f32.mrb[0].mxu0
    %v385 = vpop.f32.mrb[0].mxu0
    %v386 = vadd.f32 %v325, %v385
    %v387 = vpop.f32.mrb[0].mxu0
    %388 = vmatprep.mubr.bf16.mxu0 0
    %389 = vmatmul.mubr.bf16.gmra.mrb[0].mxu0 %v345
    %v390 = vpop.f32.mrb[0].mxu0
    %v391 = vadd.f32 %v330, %v390
    %v392 = vpop.f32.mrb[0].mxu0
    %v393 = vpop.f32.mrb[0].mxu0
    %v394 = vadd.f32 %v333, %v393
    %v395 = vpop.f32.mrb[0].mxu0
    %396 = vdwg.mxu0
    %v397 = vmul.f32 %v383, %v383
    %v398 = vmul.f32 %v386, %v386
    %v399 = vmul.f32 %v391, %v391
    %v400 = vmul.f32 %v394, %v394
    %v401 = vadd.f32 %v397, %v398
    %v402 = vadd.f32 %v401, %v399
    %v403 = vadd.f32 %v402, %v400
    %v404 = vrot.slane %v403, 4
    %v405 = vadd.f32 %v403, %v404
    %v406 = vrot.slane %v405, 2
    %v407 = vadd.f32 %v405, %v406
    %v408 = vrot.slane %v407, 1
    %v409 = vadd.f32 %v407, %v408
    %v410 = vrsqrt.pop %v409
    %v411 = vmul.f32 %v409, %v410
    %vm412 = vcmp.eq.f32.partialorder %v409, inf
    %v413 = vsel %vm412, %v409, %v411
    %vm414 = vcmp.eq.f32.partialorder %v409, 0.0
    %v415 = vand.u32 %v409, 2147483648
    %v416 = vsel %vm414, %v415, %v413
    %s417 = sld [smem:[#allocation2]]
    %v418 = vstv %s417
    %v419 = vsub.f32 %v416, %v418
    %v420 = vmax.f32 %v419, 0.0
    %421 = vst [vmem:[#allocation9] sm:$0x1] %v420
    // Predicated region
    $region30: #{tpu_custom_call.1} parent=1 // pred_check
      _
    $region31: #{tpu_custom_call.1} parent=1 // pred_check_branch
      %423 = sbr.rel (0) target = $region33
    $region32: #{tpu_custom_call.1} parent=1 // pred_region
      %s425 = ssub.s32 16, 16
      %426 = vsyncadd [#allocation5], %s425
      %s428 = sshll.u32 [#allocation9], 4
      %s429 = int_to_ptr.vmem [resolvable:$true] %s428
      %431 = dma.vmem_to_hbm [thread:$0]  %s429, 16, %s4, [#allocation5]
    $region33: #{tpu_custom_call.1} parent=1 // pred_fallthru
      _
    // Predicated region
    $region34: #{tpu_custom_call.1} parent=1 // pred_check
      _
    $region35: #{tpu_custom_call.1} parent=1 // pred_check_branch
      %433 = sbr.rel (0) target = $region37
    $region36: #{tpu_custom_call.1} parent=1 // pred_region
      %434 = dma.done [#allocation5], 16
    $region37: #{tpu_custom_call.1} parent=1 // pred_fallthru
      _
    %435 = vsyncpa [#allocation4], 1
    %436 = vsyncpa [#allocation7], 1
    %437 = vsyncpa [#allocation5], 1

</llo_original>
